<compile_context>
chip_gen: v7x
topology: tpu7x:2x2x1
jax: 0.10.0
libtpu: 0.0.40
codegen_flags: <defaults>
</compile_context>

<pallas_src>
import functools

import numpy as np
import jax
import jax.numpy as jnp
from jax import lax
from jax.experimental import pallas as pl
from jax.experimental.pallas import tpu as pltpu


@functools.lru_cache(maxsize=None)
def _make_freq_bands(max_freq_log2=10.0, num_freqs=10, log_sampling=True):
    """Host-side (numpy) frequency bands, cached — no device round trip."""
    if log_sampling:
        bands = 2.0 ** np.linspace(0.0, float(max_freq_log2), int(num_freqs))
    else:
        bands = np.linspace(2.0 ** 0.0, 2.0 ** float(max_freq_log2), int(num_freqs))
    return tuple(float(np.float32(b)) for b in bands)


@functools.lru_cache(maxsize=None)
def _make_table(freq_bands, d):
    """(d+2, out_dim) f32 constant table, cached on device.

    Rows 0..d-1 : W[j, c] = scale[c] if c % d == j else 0   (per-column scale)
    Row  d      : 1.0 where column is a sin column, else 0
    Row  d+1    : 1.0 where column is a cos column, else 0
    Column groups of width d: group 0 -> identity, group 2k+1 -> sin(x*f_k),
    group 2k+2 -> cos(x*f_k)."""
    n_groups = 1 + 2 * len(freq_bands)
    out_dim = d * n_groups
    scale = np.ones((out_dim,), dtype=np.float32)
    is_sin = np.zeros((out_dim,), dtype=np.float32)
    is_cos = np.zeros((out_dim,), dtype=np.float32)
    for k, f in enumerate(freq_bands):
        s0 = (1 + 2 * k) * d
        c0 = (2 + 2 * k) * d
        scale[s0:s0 + d] = np.float32(f)
        scale[c0:c0 + d] = np.float32(f)
        is_sin[s0:s0 + d] = 1.0
        is_cos[c0:c0 + d] = 1.0
    w = np.zeros((d, out_dim), dtype=np.float32)
    for c in range(out_dim):
        w[c % d, c] = scale[c]
    tab = np.concatenate([w, is_sin[None, :], is_cos[None, :]], axis=0)
    return jnp.asarray(tab)


def _embedder_kernel(x_ref, tab_ref, o_ref, *, d, row_chunk):
    """One grid step: encode a (t, d) row block into a (t, out_dim) block.

    The block is processed in `row_chunk`-row compute chunks so the large DMA
    tile does not imply large (t, out_dim) f32 intermediates in VMEM."""
    t = x_ref.shape[0]
    out_dim = o_ref.shape[1]
    n_iter = t // row_chunk                      # static (wrapper guarantees divisibility)

    tab = tab_ref[...].astype(jnp.float32)       # (d+2, out_dim), ~1.3 KB
    # Hoisted loop invariants (one broadcast each, reused every chunk):
    w_rows = [jnp.broadcast_to(tab[j:j + 1, :], (row_chunk, out_dim))
              for j in range(d)]
    sin_mask = jnp.broadcast_to(tab[d:d + 1, :] != 0.0, (row_chunk, out_dim))
    cos_mask = jnp.broadcast_to(tab[d + 1:d + 2, :] != 0.0, (row_chunk, out_dim))

    def body(i, carry):
        r0 = pl.multiple_of(i * row_chunk, row_chunk)
        x = x_ref[pl.ds(r0, row_chunk), :].astype(jnp.float32)      # (rc, d)
        # xf[:, c] = x[:, c % d] * scale[c]: exactly one nonzero term per column
        # (all other terms are exact zeros), so every product is the same
        # f32-rounded x*f the reference computes.
        xf = x[:, 0:1] * w_rows[0]
        for j in range(1, d):                    # d is small & static -> unrolled
            xf = xf + x[:, j:j + 1] * w_rows[j]
        s = jnp.sin(xf)                          # one pass over the chunk slab
        c = jnp.cos(xf)
        out = jnp.where(sin_mask, s, jnp.where(cos_mask, c, xf))
        o_ref[pl.ds(r0, row_chunk), :] = out.astype(o_ref.dtype)
        return carry

    lax.fori_loop(0, n_iter, body, 0)


def _round_up(n, m):
    return ((n + m - 1) // m) * m


def embedder_forward(x, *, max_freq_log2=10.0, num_freqs=10, log_sampling=True,
                     include_input=True, tile_rows=32768, row_chunk=512):
    """x: [..., d] -> [..., d * (1 + 2*num_freqs)] positional encoding."""
    # forward() always prepends `inputs` in the PyTorch module, independent of
    # include_input (embed_fns is empty) — so the flag does not change out_dim.
    del include_input
    freq_bands = _make_freq_bands(float(max_freq_log2), int(num_freqs),
                                  bool(log_sampling))
    d = int(x.shape[-1])
    out_dim = d * (1 + 2 * len(freq_bands))

    lead_shape = x.shape[:-1]
    n_rows = 1
    for s_ in lead_shape:
        n_rows *= int(s_)
    x2 = x.reshape(n_rows, d)

    # --- tiling -------------------------------------------------------------
    # Pipeline tile t: large (amortizes per-step overhead, ~8 MB of output at
    # 32768 rows) and a multiple of the in-kernel compute chunk; clamped to the
    # data so small inputs are not blown up.  Ragged tails are handled by the
    # cdiv grid + Pallas boundary masking (no pad / no post-slice copy).
    row_chunk = max(8, _round_up(int(row_chunk), 8))
    if n_rows <= row_chunk:
        t = _round_up(max(n_rows, 1), 8)
        rc = t
    else:
        t = min(_round_up(int(tile_rows), row_chunk), _round_up(n_rows, row_chunk))
        t = max(t, row_chunk)
        rc = row_chunk
    grid = (pl.cdiv(n_rows, t),)

    tab = _make_table(freq_bands, d)             # (d+2, out_dim), cached on device

    # VMEM budget: double-buffered in/out tiles + small headroom for the
    # per-chunk intermediates.  Raised explicitly so 32768-row tiles land on
    # v5e (16 MiB scoped default); capped at 64 MiB (v7x physical VMEM).
    dsize = jnp.dtype(x2.dtype).itemsize
    io_bytes = 2 * t * (d + out_dim) * dsize + 2 * (d + 2) * out_dim * 4
    vmem_limit = int(min(max(io_bytes + (16 << 20), 32 << 20), 64 << 20))

    out = pl.pallas_call(
        functools.partial(_embedder_kernel, d=d, row_chunk=rc),
        out_shape=jax.ShapeDtypeStruct((n_rows, out_dim), x.dtype),
        grid=grid,
        in_specs=[
            pl.BlockSpec((t, d), lambda i: (i, 0)),
            pl.BlockSpec((d + 2, out_dim), lambda i: (0, 0)),   # resident constant
        ],
        out_specs=pl.BlockSpec((t, out_dim), lambda i: (i, 0)),
        compiler_params=pltpu.CompilerParams(
            dimension_semantics=("parallel",),   # row tiles are independent
            vmem_limit_bytes=vmem_limit,
        ),
    )(x2, tab)

    return out.reshape(*lead_shape, out_dim)


def embedder_reference(x, *, max_freq_log2=10.0, num_freqs=10, log_sampling=True):
    freq_bands = _make_freq_bands(float(max_freq_log2), int(num_freqs),
                                  bool(log_sampling))
    parts = [x]
    for f in freq_bands:
        parts.append(jnp.sin(x * f))
        parts.append(jnp.cos(x * f))
    return jnp.concatenate(parts, axis=-1)


if __name__ == "__main__":
    key = jax.random.PRNGKey(0)
    k1, k2, k3 = jax.random.split(key, 3)

    # batch=2, seq=8 points, input_dims=3 (module default)
    x = jax.random.normal(k1, (2, 8, 3), dtype=jnp.float32)
    out = jax.block_until_ready(embedder_forward(x))
    ref = embedder_reference(x)
    assert out.shape == (2, 8, 63), out.shape
    assert jnp.allclose(out, ref, atol=1e-5, rtol=1e-5), "mismatch vs reference"

    # Ragged row count (not a multiple of 8) exercises the boundary-masked tail.
    x2 = jax.random.normal(k2, (3, 7, 3), dtype=jnp.float32)
    out2 = jax.block_until_ready(embedder_forward(x2))
    ref2 = embedder_reference(x2)
    assert out2.shape == (3, 7, 63), out2.shape
    assert jnp.allclose(out2, ref2, atol=1e-5, rtol=1e-5), "mismatch (ragged)"

    # Multi-tile grid + in-kernel chunk loop + ragged tail block.
    x3 = jax.random.uniform(k3, (5000, 3), dtype=jnp.float32,
                            minval=-1.0, maxval=1.0)
    out3 = jax.block_until_ready(embedder_forward(x3, tile_rows=1024))
    ref3 = embedder_reference(x3)
    assert out3.shape == (5000, 63), out3.shape
    assert jnp.allclose(out3, ref3, atol=1e-5, rtol=1e-5), "mismatch (multi-tile)"

    print("KERNEL_OK")
</pallas_src>

<mosaic_0001>
module attributes {stable_mosaic.version = 11 : i64} {
  func.func @_embedder_kernel(%arg0: i32, %arg1: memref<16x3xf32, #tpu.memory_space<vmem>>, %arg2: memref<5x63xf32, #tpu.memory_space<vmem>>, %arg3: memref<16x63xf32, #tpu.memory_space<vmem>>) attributes {dimension_semantics = [#tpu.dimension_semantics<parallel>], iteration_bounds = array<i64: 1>, scalar_prefetch = 0 : i64, scratch_operands = 0 : i64, tpu.core_type = #tpu.core_type<tc>, window_params = [{transform_indices = @transform_0, window_bounds = array<i64: 16, 3>}, {pipeline_mode = #tpu.pipeline_mode<synchronous>, transform_indices = @transform_1, window_bounds = array<i64: 5, 63>}, {transform_indices = @transform_2, window_bounds = array<i64: 16, 63>}]} {
    %c0 = arith.constant 0 : index
    %c0_0 = arith.constant 0 : index
    %0 = vector.load %arg2[%c0, %c0_0] : memref<5x63xf32, #tpu.memory_space<vmem>>, vector<5x63xf32>
    %1 = vector.extract_strided_slice %0 {offsets = [0, 0], sizes = [1, 63], strides = [1, 1]} : vector<5x63xf32> to vector<1x63xf32>
    %2 = vector.shape_cast %1 : vector<1x63xf32> to vector<1x63xf32>
    %3 = vector.broadcast %2 : vector<1x63xf32> to vector<16x63xf32>
    %4 = vector.extract_strided_slice %0 {offsets = [1, 0], sizes = [1, 63], strides = [1, 1]} : vector<5x63xf32> to vector<1x63xf32>
    %5 = vector.shape_cast %4 : vector<1x63xf32> to vector<1x63xf32>
    %6 = vector.broadcast %5 : vector<1x63xf32> to vector<16x63xf32>
    %7 = vector.extract_strided_slice %0 {offsets = [2, 0], sizes = [1, 63], strides = [1, 1]} : vector<5x63xf32> to vector<1x63xf32>
    %8 = vector.shape_cast %7 : vector<1x63xf32> to vector<1x63xf32>
    %9 = vector.broadcast %8 : vector<1x63xf32> to vector<16x63xf32>
    %10 = vector.extract_strided_slice %0 {offsets = [3, 0], sizes = [1, 63], strides = [1, 1]} : vector<5x63xf32> to vector<1x63xf32>
    %cst = arith.constant 0.000000e+00 : f32
    %11 = vector.broadcast %cst : f32 to vector<1x63xf32>
    %12 = arith.cmpf one, %10, %11 : vector<1x63xf32>
    %13 = vector.shape_cast %12 : vector<1x63xi1> to vector<1x63xi1>
    %14 = vector.broadcast %13 : vector<1x63xi1> to vector<16x63xi1>
    %15 = vector.extract_strided_slice %0 {offsets = [4, 0], sizes = [1, 63], strides = [1, 1]} : vector<5x63xf32> to vector<1x63xf32>
    %cst_1 = arith.constant 0.000000e+00 : f32
    %16 = vector.broadcast %cst_1 : f32 to vector<1x63xf32>
    %17 = arith.cmpf one, %15, %16 : vector<1x63xf32>
    %18 = vector.shape_cast %17 : vector<1x63xi1> to vector<1x63xi1>
    %19 = vector.broadcast %18 : vector<1x63xi1> to vector<16x63xi1>
    %c0_i32 = arith.constant 0 : i32
    %c16_i32 = arith.constant 16 : i32
    %20 = arith.muli %c0_i32, %c16_i32 : i32
    %21 = tpu.assume_multiple %20, 16 : i32
    %22 = arith.index_cast %21 : i32 to index
    %c0_2 = arith.constant 0 : index
    %23 = vector.load %arg1[%22, %c0_2] : memref<16x3xf32, #tpu.memory_space<vmem>>, vector<16x3xf32>
    %24 = vector.extract_strided_slice %23 {offsets = [0, 0], sizes = [16, 1], strides = [1, 1]} : vector<16x3xf32> to vector<16x1xf32>
    %25 = vector.broadcast %24 : vector<16x1xf32> to vector<16x63xf32>
    %26 = arith.mulf %25, %3 : vector<16x63xf32>
    %27 = vector.extract_strided_slice %23 {offsets = [0, 1], sizes = [16, 1], strides = [1, 1]} : vector<16x3xf32> to vector<16x1xf32>
    %28 = vector.broadcast %27 : vector<16x1xf32> to vector<16x63xf32>
    %29 = arith.mulf %28, %6 : vector<16x63xf32>
    %30 = arith.addf %26, %29 : vector<16x63xf32>
    %31 = vector.extract_strided_slice %23 {offsets = [0, 2], sizes = [16, 1], strides = [1, 1]} : vector<16x3xf32> to vector<16x1xf32>
    %32 = vector.broadcast %31 : vector<16x1xf32> to vector<16x63xf32>
    %33 = arith.mulf %32, %9 : vector<16x63xf32>
    %34 = arith.addf %30, %33 : vector<16x63xf32>
    %35 = math.sin %34 : vector<16x63xf32>
    %36 = math.cos %34 : vector<16x63xf32>
    %37 = arith.select %19, %36, %34 : vector<16x63xi1>, vector<16x63xf32>
    %38 = arith.select %14, %35, %37 : vector<16x63xi1>, vector<16x63xf32>
    %39 = arith.index_cast %21 : i32 to index
    %c0_3 = arith.constant 0 : index
    %40 = vector.load %arg3[%39, %c0_3] : memref<16x63xf32, #tpu.memory_space<vmem>>, vector<16x63xf32>
    tpu.vector_store %arg3[%39, %c0_3], %38 {strides = array<i32>} : memref<16x63xf32, #tpu.memory_space<vmem>>, vector<16x63xf32>,
    %c1_i32 = arith.constant 1 : i32
    return
  }
  func.func @transform_0(%arg0: i32) -> (i32, i32) {
    %c0_i32 = arith.constant 0 : i32
    %c0_i32_0 = arith.constant 0 : i32
    return %arg0, %c0_i32 : i32, i32
  }
  func.func @transform_1(%arg0: i32) -> (i32, i32) {
    %c0_i32 = arith.constant 0 : i32
    %c0_i32_0 = arith.constant 0 : i32
    %c0_i32_1 = arith.constant 0 : i32
    return %c0_i32, %c0_i32_0 : i32, i32
  }
  func.func @transform_2(%arg0: i32) -> (i32, i32) {
    %c0_i32 = arith.constant 0 : i32
    %c0_i32_0 = arith.constant 0 : i32
    return %arg0, %c0_i32 : i32, i32
  }
}

</mosaic_0001>

<llo_original>
// kernel: tpu_custom_call.1
$region0: #{tpu_custom_call.1}
  #allocation0 [shape = 'u32[]', space=smem, size = 0x4, offset = 0x4, fixed_abs, tag = 'smem constant byte address 0x4 - core index']
  #allocation1 [shape = 'u32[144,128]{1,0:T(1,128)}', space=vmem, size = 0x12000, scoped, tag = 'internal scratch']
  %s0 = inlined_call_operand.vmem [shape: f32[16,3], index: 0, kind: input, shape index: {}]
  %s1 = inlined_call_operand.vmem [shape: f32[5,63], index: 1, kind: input, shape index: {}]
  %s2 = inlined_call_operand.hbm [shape: f32[16,63], index: 2, kind: output, shape index: {}]
  %s3 = sld [smem:[#allocation0]]
  $region18: #{tpu_custom_call.1} parent=0
    _
  %s5 = ssub.s32 1, %s3
  %s6 = scalar_select 0, %s5, %s3
  $region1: #{tpu_custom_call.1} parent=0
    #allocation2 [shape = 'u8[8192]{0}', space=vmem, size = 0x2000, scoped, tag = 'output window, operand 0, single buffered']
    #allocation3 [shape = 's32[1]{0}', space=sflag, size = 0x4, scoped, tag = 'scoped memory for tpu_custom_call.1']
    %7 = vsyncpa [#allocation3], 0
    // Predicated region
    $region2: #{tpu_custom_call.1} parent=1 // pred_check
      _
    $region3: #{tpu_custom_call.1} parent=1 // pred_check_branch
      %9 = sbr.rel (0) target = $region5
    $region4: #{tpu_custom_call.1} parent=1 // pred_region
      _
    $region5: #{tpu_custom_call.1} parent=1 // pred_fallthru
      _
    // Predicated region
    $region6: #{tpu_custom_call.1} parent=1 // pred_check
      _
    $region7: #{tpu_custom_call.1} parent=1 // pred_check_branch
      %11 = sbr.rel (0) target = $region9
    $region8: #{tpu_custom_call.1} parent=1 // pred_region
      _
    $region9: #{tpu_custom_call.1} parent=1 // pred_fallthru
      _
    %v12 = vld [vmem:[%s1] sm:$0x1f]
    %v13 = vlaneseq
    %v14 = vshrl.u32 %v13, 7
    %v15 = vsub.s32 0, %v14
    %v16 = vrot.slane %v12, %v15
    %v17 = vlaneseq
    %v18 = vshrl.u32 %v17, 7
    %v19 = vsub.s32 1, %v18
    %v20 = vrot.slane %v12, %v19
    %v21 = vlaneseq
    %v22 = vshrl.u32 %v21, 7
    %v23 = vsub.s32 2, %v22
    %v24 = vrot.slane %v12, %v23
    %vm25 = vcmp.ne.f32.partialorder %v12, 0.0
    %v26 = vsel %vm25, 1, 0
    %v27 = vlaneseq
    %v28 = vshrl.u32 %v27, 7
    %v29 = vsub.s32 3, %v28
    %v30 = vrot.slane %v26, %v29
    %vm31 = vcmp.eq.s32.totalorder %v30, 1
    %v32 = vlaneseq
    %v33 = vshrl.u32 %v32, 7
    %v34 = vsub.s32 4, %v33
    %v35 = vrot.slane %v26, %v34
    %vm36 = vcmp.eq.s32.totalorder %v35, 1
    %v37 = vld [vmem:[%s0] sm:$0xff]
    %v38 = vld [vmem:[%s0 + $0x8] sm:$0xff]
    %40 = vset.pattern.permute.xlu0 0
    %41 = vperm.xlu0 %40, %v37
    %v42 = vpop.permute.xlu0 %41
    %45 = vset.pattern.permute.xlu0 0
    %46 = vperm.xlu0 %45, %v38
    %v47 = vpop.permute.xlu0 %46
    %v49 = vmul.f32 %v42, %v16
    %v50 = vmul.f32 %v47, %v16
    %51 = vset.pattern.permute.xlu0 1
    %52 = vperm.xlu0 %51, %v37
    %v53 = vpop.permute.xlu0 %52
    %55 = vset.pattern.permute.xlu0 1
    %56 = vperm.xlu0 %55, %v38
    %v57 = vpop.permute.xlu0 %56
    %v59 = vmul.f32 %v53, %v20
    %v60 = vmul.f32 %v57, %v20
    %v61 = vadd.f32 %v49, %v59
    %v62 = vadd.f32 %v50, %v60
    %63 = vset.pattern.permute.xlu0 2
    %64 = vperm.xlu0 %63, %v37
    %v65 = vpop.permute.xlu0 %64
    %67 = vset.pattern.permute.xlu0 2
    %68 = vperm.xlu0 %67, %v38
    %v69 = vpop.permute.xlu0 %68
    %v71 = vmul.f32 %v65, %v24
    %v72 = vmul.f32 %v69, %v24
    %v73 = vadd.f32 %v61, %v71
    %v74 = vadd.f32 %v62, %v72
    %v75 = vand.u32 2147483647, %v73
    %vm76 = vcmp.le.f32.partialorder %v75, 0.7853982
    %vm77 = vcmp.lt.s32.totalorder %v73, 0
    %v78 = vand.u32 %v73, 2139095040
    %v79 = vshrl.u32 %v78, 23
    %v80 = vsub.s32 %v79, 127
    %v81 = vand.u32 2147483647, %v73
    %v82 = vand.u32 %v81, 8388607
    %v83 = vor.u32 %v82, 8388608
    %v84 = vsub.s32 0, %v83
    %v85 = vadd.s32 %v80, 1
    %vm86 = vcmp.gt.s32.totalorder %v85, 0
    %v87 = vsel %vm86, %v85, 0
    %v88 = vshrl.u32 %v87, 5
    %v89 = vand.u32 %v87, 31
    %v90 = vsub.s32 32, %v89
    %v91 = vshrl.u32 683565275, %v90
    %v92 = vshll.u32 683565275, %v89
    %v93 = vshrl.u32 2475754826, %v90
    %v94 = vor.u32 %v92, %v93
    %v95 = vshll.u32 2475754826, %v89
    %v96 = vshrl.u32 2131351028, %v90
    %v97 = vor.u32 %v95, %v96
    %v98 = vshll.u32 2131351028, %v89
    %v99 = vshrl.u32 2102212464, %v90
    %v100 = vor.u32 %v98, %v99
    %v101 = vshll.u32 2102212464, %v89
    %v102 = vshrl.u32 920167782, %v90
    %v103 = vor.u32 %v101, %v102
    %v104 = vshll.u32 920167782, %v89
    %v105 = vshrl.u32 1326507024, %v90
    %v106 = vor.u32 %v104, %v105
    %vm107 = vcmp.lt.s32.totalorder %v88, 1
    %vm108 = vcmp.lt.s32.totalorder %v88, 2
    %vm109 = vcmp.lt.s32.totalorder %v88, 3
    %vm110 = vcmp.lt.s32.totalorder %v88, 4
    %v111 = vsel %vm107, %v91, %v94
    %v112 = vsel %vm110, %v100, 2102212464
    %v113 = vsel %vm109, %v97, %v112
    %v114 = vsel %vm108, %v111, %v113
    %v115 = vsel %vm107, %v94, %v97
    %v116 = vsel %vm110, %v103, 920167782
    %v117 = vsel %vm109, %v100, %v116
    %v118 = vsel %vm108, %v115, %v117
    %v119 = vsel %vm107, %v97, %v100
    %v120 = vsel %vm110, %v106, 1326507024
    %v121 = vsel %vm109, %v103, %v120
    %v122 = vsel %vm108, %v119, %v121
    %v123 = vshll.u32 %v83, 8
    %v124 = vmul.u32.u64.compose %v123, %v122
    %v125 = vextract.low.u32 %v124
    %v126 = vextract.high.u32 %v124
    %v127 = vmul.u32.u64.compose %v123, %v118
    %v128 = vextract.low.u32 %v127
    %v129 = vextract.high.u32 %v127
    %v130 = vmul.u32 %v123, %v114
    %v131 = vadd.s32 %v126, %v128
    %vm132 = vc.u32 %v126, %v128
    %v133 = vadd.s32 %v129, 1
    %v134 = vsel %vm132, %v133, %v129
    %v135 = vadd.s32 %v130, %v134
    %v136 = vadd.s32 %v135, 536870912
    %v137 = vshrl.u32 %v136, 30
    %v138 = vshll.u32 %v137, 30
    %v139 = vsub.s32 %v135, %v138
    %vm140 = vcmp.lt.s32.totalorder %v139, 0
    %v141 = vsub.s32 0, %v139
    %v142 = vsel %vm140, %v141, %v139
    %v143 = vclz %v142
    %v144 = vsub.s32 %v143, 2
    %vm145 = vcmp.gt.s32.totalorder 0, %v144
    %v146 = vsel %vm145, 0, %v144
    %v147 = vsub.s32 32, %v146
    %v148 = vshll.u32 %v139, %v146
    %v149 = vshrl.u32 %v131, %v147
    %v150 = vor.u32 %v148, %v149
    %v151 = vsub.s32 4294967266, %v146
    %v152 = vadd.s32 %v151, 127
    %v153 = vshll.u32 %v152, 23
    %v154 = vor.u32 4788187, %v153
    %v155 = vand.u32 2147483647, %v154
    %v157 = vcvt.s32.f32 %v150
    %v158 = vmul.f32 %v157, %v155
    %v159 = vxor.u32 %v158, 2147483648
    %v160 = vsel %vm77, %v159, %v158
    %v161 = vsub.s32 4, %v137
    %v162 = vsel %vm77, %v161, %v137
    %v163 = vsel %vm76, %v73, %v160
    %v164 = vsel %vm76, 0, %v162
    %v165 = vcosq.f32.pop %v163
    %v166 = vsinq.f32.pop %v163
    %vm167 = vweird.f32 %v73
    %v168 = vadd.s32 %v164, 3
    %v169 = vand.u32 %v168, 3
    %vm170 = vcmp.lt.s32.totalorder %v169, 2
    %vm171 = vcmp.eq.s32.totalorder %v169, 0
    %v172 = vxor.u32 %v166, 2147483648
    %v173 = vsel %vm171, %v165, %v172
    %vm174 = vcmp.eq.s32.totalorder %v169, 2
    %v175 = vxor.u32 %v165, 2147483648
    %v176 = vsel %vm174, %v175, %v166
    %v177 = vsel %vm170, %v173, %v176
    %v178 = vsel %vm167, nan, %v177
    %v179 = vand.u32 2147483647, %v74
    %vm180 = vcmp.le.f32.partialorder %v179, 0.7853982
    %vm181 = vcmp.lt.s32.totalorder %v74, 0
    %v182 = vand.u32 %v74, 2139095040
    %v183 = vshrl.u32 %v182, 23
    %v184 = vsub.s32 %v183, 127
    %v185 = vand.u32 2147483647, %v74
    %v186 = vand.u32 %v185, 8388607
    %v187 = vor.u32 %v186, 8388608
    %v188 = vsub.s32 0, %v187
    %v189 = vadd.s32 %v184, 1
    %vm190 = vcmp.gt.s32.totalorder %v189, 0
    %v191 = vsel %vm190, %v189, 0
    %v192 = vshrl.u32 %v191, 5
    %v193 = vand.u32 %v191, 31
    %v194 = vsub.s32 32, %v193
    %v195 = vshrl.u32 683565275, %v194
    %v196 = vshll.u32 683565275, %v193
    %v197 = vshrl.u32 2475754826, %v194
    %v198 = vor.u32 %v196, %v197
    %v199 = vshll.u32 2475754826, %v193
    %v200 = vshrl.u32 2131351028, %v194
    %v201 = vor.u32 %v199, %v200
    %v202 = vshll.u32 2131351028, %v193
    %v203 = vshrl.u32 2102212464, %v194
    %v204 = vor.u32 %v202, %v203
    %v205 = vshll.u32 2102212464, %v193
    %v206 = vshrl.u32 920167782, %v194
    %v207 = vor.u32 %v205, %v206
    %v208 = vshll.u32 920167782, %v193
    %v209 = vshrl.u32 1326507024, %v194
    %v210 = vor.u32 %v208, %v209
    %vm211 = vcmp.lt.s32.totalorder %v192, 1
    %vm212 = vcmp.lt.s32.totalorder %v192, 2
    %vm213 = vcmp.lt.s32.totalorder %v192, 3
    %vm214 = vcmp.lt.s32.totalorder %v192, 4
    %v215 = vsel %vm211, %v195, %v198
    %v216 = vsel %vm214, %v204, 2102212464
    %v217 = vsel %vm213, %v201, %v216
    %v218 = vsel %vm212, %v215, %v217
    %v219 = vsel %vm211, %v198, %v201
    %v220 = vsel %vm214, %v207, 920167782
    %v221 = vsel %vm213, %v204, %v220
    %v222 = vsel %vm212, %v219, %v221
    %v223 = vsel %vm211, %v201, %v204
    %v224 = vsel %vm214, %v210, 1326507024
    %v225 = vsel %vm213, %v207, %v224
    %v226 = vsel %vm212, %v223, %v225
    %v227 = vshll.u32 %v187, 8
    %v228 = vmul.u32.u64.compose %v227, %v226
    %v229 = vextract.low.u32 %v228
    %v230 = vextract.high.u32 %v228
    %v231 = vmul.u32.u64.compose %v227, %v222
    %v232 = vextract.low.u32 %v231
    %v233 = vextract.high.u32 %v231
    %v234 = vmul.u32 %v227, %v218
    %v235 = vadd.s32 %v230, %v232
    %vm236 = vc.u32 %v230, %v232
    %v237 = vadd.s32 %v233, 1
    %v238 = vsel %vm236, %v237, %v233
    %v239 = vadd.s32 %v234, %v238
    %v240 = vadd.s32 %v239, 536870912
    %v241 = vshrl.u32 %v240, 30
    %v242 = vshll.u32 %v241, 30
    %v243 = vsub.s32 %v239, %v242
    %vm244 = vcmp.lt.s32.totalorder %v243, 0
    %v245 = vsub.s32 0, %v243
    %v246 = vsel %vm244, %v245, %v243
    %v247 = vclz %v246
    %v248 = vsub.s32 %v247, 2
    %vm249 = vcmp.gt.s32.totalorder 0, %v248
    %v250 = vsel %vm249, 0, %v248
    %v251 = vsub.s32 32, %v250
    %v252 = vshll.u32 %v243, %v250
    %v253 = vshrl.u32 %v235, %v251
    %v254 = vor.u32 %v252, %v253
    %v255 = vsub.s32 4294967266, %v250
    %v256 = vadd.s32 %v255, 127
    %v257 = vshll.u32 %v256, 23
    %v258 = vor.u32 4788187, %v257
    %v259 = vand.u32 2147483647, %v258
    %v261 = vcvt.s32.f32 %v254
    %v262 = vmul.f32 %v261, %v259
    %v263 = vxor.u32 %v262, 2147483648
    %v264 = vsel %vm181, %v263, %v262
    %v265 = vsub.s32 4, %v241
    %v266 = vsel %vm181, %v265, %v241
    %v267 = vsel %vm180, %v74, %v264
    %v268 = vsel %vm180, 0, %v266
    %v269 = vcosq.f32.pop %v267
    %v270 = vsinq.f32.pop %v267
    %vm271 = vweird.f32 %v74
    %v272 = vadd.s32 %v268, 3
    %v273 = vand.u32 %v272, 3
    %vm274 = vcmp.lt.s32.totalorder %v273, 2
    %vm275 = vcmp.eq.s32.totalorder %v273, 0
    %v276 = vxor.u32 %v270, 2147483648
    %v277 = vsel %vm275, %v269, %v276
    %vm278 = vcmp.eq.s32.totalorder %v273, 2
    %v279 = vxor.u32 %v269, 2147483648
    %v280 = vsel %vm278, %v279, %v270
    %v281 = vsel %vm274, %v277, %v280
    %v282 = vsel %vm271, nan, %v281
    %v283 = vand.u32 2147483647, %v73
    %vm284 = vcmp.le.f32.partialorder %v283, 0.7853982
    %vm285 = vcmp.lt.s32.totalorder %v73, 0
    %v286 = vand.u32 %v73, 2139095040
    %v287 = vshrl.u32 %v286, 23
    %v288 = vsub.s32 %v287, 127
    %v289 = vand.u32 2147483647, %v73
    %v290 = vand.u32 %v289, 8388607
    %v291 = vor.u32 %v290, 8388608
    %v292 = vsub.s32 0, %v291
    %v293 = vadd.s32 %v288, 1
    %vm294 = vcmp.gt.s32.totalorder %v293, 0
    %v295 = vsel %vm294, %v293, 0
    %v296 = vshrl.u32 %v295, 5
    %v297 = vand.u32 %v295, 31
    %v298 = vsub.s32 32, %v297
    %v299 = vshrl.u32 683565275, %v298
    %v300 = vshll.u32 683565275, %v297
    %v301 = vshrl.u32 2475754826, %v298
    %v302 = vor.u32 %v300, %v301
    %v303 = vshll.u32 2475754826, %v297
    %v304 = vshrl.u32 2131351028, %v298
    %v305 = vor.u32 %v303, %v304
    %v306 = vshll.u32 2131351028, %v297
    %v307 = vshrl.u32 2102212464, %v298
    %v308 = vor.u32 %v306, %v307
    %v309 = vshll.u32 2102212464, %v297
    %v310 = vshrl.u32 920167782, %v298
    %v311 = vor.u32 %v309, %v310
    %v312 = vshll.u32 920167782, %v297
    %v313 = vshrl.u32 1326507024, %v298
    %v314 = vor.u32 %v312, %v313
    %vm315 = vcmp.lt.s32.totalorder %v296, 1
    %vm316 = vcmp.lt.s32.totalorder %v296, 2
    %vm317 = vcmp.lt.s32.totalorder %v296, 3
    %vm318 = vcmp.lt.s32.totalorder %v296, 4
    %v319 = vsel %vm315, %v299, %v302
    %v320 = vsel %vm318, %v308, 2102212464
    %v321 = vsel %vm317, %v305, %v320
    %v322 = vsel %vm316, %v319, %v321
    %v323 = vsel %vm315, %v302, %v305
    %v324 = vsel %vm318, %v311, 920167782
    %v325 = vsel %vm317, %v308, %v324
    %v326 = vsel %vm316, %v323, %v325
    %v327 = vsel %vm315, %v305, %v308
    %v328 = vsel %vm318, %v314, 1326507024
    %v329 = vsel %vm317, %v311, %v328
    %v330 = vsel %vm316, %v327, %v329
    %v331 = vshll.u32 %v291, 8
    %v332 = vmul.u32.u64.compose %v331, %v330
    %v333 = vextract.low.u32 %v332
    %v334 = vextract.high.u32 %v332
    %v335 = vmul.u32.u64.compose %v331, %v326
    %v336 = vextract.low.u32 %v335
    %v337 = vextract.high.u32 %v335
    %v338 = vmul.u32 %v331, %v322
    %v339 = vadd.s32 %v334, %v336
    %vm340 = vc.u32 %v334, %v336
    %v341 = vadd.s32 %v337, 1
    %v342 = vsel %vm340, %v341, %v337
    %v343 = vadd.s32 %v338, %v342
    %v344 = vadd.s32 %v343, 536870912
    %v345 = vshrl.u32 %v344, 30
    %v346 = vshll.u32 %v345, 30
    %v347 = vsub.s32 %v343, %v346
    %vm348 = vcmp.lt.s32.totalorder %v347, 0
    %v349 = vsub.s32 0, %v347
    %v350 = vsel %vm348, %v349, %v347
    %v351 = vclz %v350
    %v352 = vsub.s32 %v351, 2
    %vm353 = vcmp.gt.s32.totalorder 0, %v352
    %v354 = vsel %vm353, 0, %v352
    %v355 = vsub.s32 32, %v354
    %v356 = vshll.u32 %v347, %v354
    %v357 = vshrl.u32 %v339, %v355
    %v358 = vor.u32 %v356, %v357
    %v359 = vsub.s32 4294967266, %v354
    %v360 = vadd.s32 %v359, 127
    %v361 = vshll.u32 %v360, 23
    %v362 = vor.u32 4788187, %v361
    %v363 = vand.u32 2147483647, %v362
    %v365 = vcvt.s32.f32 %v358
    %v366 = vmul.f32 %v365, %v363
    %v367 = vxor.u32 %v366, 2147483648
    %v368 = vsel %vm285, %v367, %v366
    %v369 = vsub.s32 4, %v345
    %v370 = vsel %vm285, %v369, %v345
    %v371 = vsel %vm284, %v73, %v368
    %v372 = vsel %vm284, 0, %v370
    %v373 = vcosq.f32.pop %v371
    %v374 = vsinq.f32.pop %v371
    %vm375 = vweird.f32 %v73
    %v376 = vand.u32 %v372, 3
    %vm377 = vcmp.lt.s32.totalorder %v376, 2
    %vm378 = vcmp.eq.s32.totalorder %v376, 0
    %v379 = vxor.u32 %v374, 2147483648
    %v380 = vsel %vm378, %v373, %v379
    %vm381 = vcmp.eq.s32.totalorder %v376, 2
    %v382 = vxor.u32 %v373, 2147483648
    %v383 = vsel %vm381, %v382, %v374
    %v384 = vsel %vm377, %v380, %v383
    %v385 = vsel %vm375, nan, %v384
    %v386 = vand.u32 2147483647, %v74
    %vm387 = vcmp.le.f32.partialorder %v386, 0.7853982
    %vm388 = vcmp.lt.s32.totalorder %v74, 0
    %v389 = vand.u32 %v74, 2139095040
    %v390 = vshrl.u32 %v389, 23
    %v391 = vsub.s32 %v390, 127
    %v392 = vand.u32 2147483647, %v74
    %v393 = vand.u32 %v392, 8388607
    %v394 = vor.u32 %v393, 8388608
    %v395 = vsub.s32 0, %v394
    %v396 = vadd.s32 %v391, 1
    %vm397 = vcmp.gt.s32.totalorder %v396, 0
    %v398 = vsel %vm397, %v396, 0
    %v399 = vshrl.u32 %v398, 5
    %v400 = vand.u32 %v398, 31
    %v401 = vsub.s32 32, %v400
    %v402 = vshrl.u32 683565275, %v401
    %v403 = vshll.u32 683565275, %v400
    %v404 = vshrl.u32 2475754826, %v401
    %v405 = vor.u32 %v403, %v404
    %v406 = vshll.u32 2475754826, %v400
    %v407 = vshrl.u32 2131351028, %v401
    %v408 = vor.u32 %v406, %v407
    %v409 = vshll.u32 2131351028, %v400
    %v410 = vshrl.u32 2102212464, %v401
    %v411 = vor.u32 %v409, %v410
    %v412 = vshll.u32 2102212464, %v400
    %v413 = vshrl.u32 920167782, %v401
    %v414 = vor.u32 %v412, %v413
    %v415 = vshll.u32 920167782, %v400
    %v416 = vshrl.u32 1326507024, %v401
    %v417 = vor.u32 %v415, %v416
    %vm418 = vcmp.lt.s32.totalorder %v399, 1
    %vm419 = vcmp.lt.s32.totalorder %v399, 2
    %vm420 = vcmp.lt.s32.totalorder %v399, 3
    %vm421 = vcmp.lt.s32.totalorder %v399, 4
    %v422 = vsel %vm418, %v402, %v405
    %v423 = vsel %vm421, %v411, 2102212464
    %v424 = vsel %vm420, %v408, %v423
    %v425 = vsel %vm419, %v422, %v424
    %v426 = vsel %vm418, %v405, %v408
    %v427 = vsel %vm421, %v414, 920167782
    %v428 = vsel %vm420, %v411, %v427
    %v429 = vsel %vm419, %v426, %v428
    %v430 = vsel %vm418, %v408, %v411
    %v431 = vsel %vm421, %v417, 1326507024
    %v432 = vsel %vm420, %v414, %v431
    %v433 = vsel %vm419, %v430, %v432
    %v434 = vshll.u32 %v394, 8
    %v435 = vmul.u32.u64.compose %v434, %v433
    %v436 = vextract.low.u32 %v435
    %v437 = vextract.high.u32 %v435
    %v438 = vmul.u32.u64.compose %v434, %v429
    %v439 = vextract.low.u32 %v438
    %v440 = vextract.high.u32 %v438
    %v441 = vmul.u32 %v434, %v425
    %v442 = vadd.s32 %v437, %v439
    %vm443 = vc.u32 %v437, %v439
    %v444 = vadd.s32 %v440, 1
    %v445 = vsel %vm443, %v444, %v440
    %v446 = vadd.s32 %v441, %v445
    %v447 = vadd.s32 %v446, 536870912
    %v448 = vshrl.u32 %v447, 30
    %v449 = vshll.u32 %v448, 30
    %v450 = vsub.s32 %v446, %v449
    %vm451 = vcmp.lt.s32.totalorder %v450, 0
    %v452 = vsub.s32 0, %v450
    %v453 = vsel %vm451, %v452, %v450
    %v454 = vclz %v453
    %v455 = vsub.s32 %v454, 2
    %vm456 = vcmp.gt.s32.totalorder 0, %v455
    %v457 = vsel %vm456, 0, %v455
    %v458 = vsub.s32 32, %v457
    %v459 = vshll.u32 %v450, %v457
    %v460 = vshrl.u32 %v442, %v458
    %v461 = vor.u32 %v459, %v460
    %v462 = vsub.s32 4294967266, %v457
    %v463 = vadd.s32 %v462, 127
    %v464 = vshll.u32 %v463, 23
    %v465 = vor.u32 4788187, %v464
    %v466 = vand.u32 2147483647, %v465
    %v468 = vcvt.s32.f32 %v461
    %v469 = vmul.f32 %v468, %v466
    %v470 = vxor.u32 %v469, 2147483648
    %v471 = vsel %vm388, %v470, %v469
    %v472 = vsub.s32 4, %v448
    %v473 = vsel %vm388, %v472, %v448
    %v474 = vsel %vm387, %v74, %v471
    %v475 = vsel %vm387, 0, %v473
    %v476 = vcosq.f32.pop %v474
    %v477 = vsinq.f32.pop %v474
    %vm478 = vweird.f32 %v74
    %v479 = vand.u32 %v475, 3
    %vm480 = vcmp.lt.s32.totalorder %v479, 2
    %vm481 = vcmp.eq.s32.totalorder %v479, 0
    %v482 = vxor.u32 %v477, 2147483648
    %v483 = vsel %vm481, %v476, %v482
    %vm484 = vcmp.eq.s32.totalorder %v479, 2
    %v485 = vxor.u32 %v476, 2147483648
    %v486 = vsel %vm484, %v485, %v477
    %v487 = vsel %vm480, %v483, %v486
    %v488 = vsel %vm478, nan, %v487
    %v489 = vsel %vm36, %v385, %v73
    %v490 = vsel %vm36, %v488, %v74
    %v491 = vsel %vm31, %v178, %v489
    %v492 = vsel %vm31, %v282, %v490
    %vm493 = vcmask 515072
    %494 = vst.msk [vmem:[#allocation2] sm:$0xff] %vm493, %v491
    %495 = vst.msk [vmem:[#allocation2 + $0x8] sm:$0xff] %vm493, %v492
    // Predicated region
    $region10: #{tpu_custom_call.1} parent=1 // pred_check
      _
    $region11: #{tpu_custom_call.1} parent=1 // pred_check_branch
      %497 = sbr.rel (0) target = $region13
    $region12: #{tpu_custom_call.1} parent=1 // pred_region
      %s499 = ssub.s32 256, 256
      %500 = vsyncadd [#allocation3], %s499
      %s501 = sshll.u32 [#allocation2], 4
      %s502 = int_to_ptr.vmem [resolvable:$true] %s501
      %507 = dma.vmem_to_hbm [thread:$0]  %s502, 256, %s2, [#allocation3], 128, 128, 8
    $region13: #{tpu_custom_call.1} parent=1 // pred_fallthru
      _
    // Predicated region
    $region14: #{tpu_custom_call.1} parent=1 // pred_check
      _
    $region15: #{tpu_custom_call.1} parent=1 // pred_check_branch
      %509 = sbr.rel (0) target = $region17
    $region16: #{tpu_custom_call.1} parent=1 // pred_region
      %510 = dma.done [#allocation3], 256
    $region17: #{tpu_custom_call.1} parent=1 // pred_fallthru
      _
    %511 = vsyncpa [#allocation3], 1

</llo_original>
